<compile_context>
chip_gen: v7x
topology: tpu7x:2x2x1
jax: 0.10.0
libtpu: 0.0.40
codegen_flags: <defaults>
</compile_context>

<pallas_src>
import jax
import jax.numpy as jnp
from jax.experimental import pallas as pl
from jax.experimental.pallas import tpu as pltpu

_LANE = 128
_SUBLANE = 8


def _round_up(x, m):
    return ((x + m - 1) // m) * m


def _cdiv(a, b):
    return (a + b - 1) // b


def _linear_head_kernel(x_ref, w_ref, b_ref, o_ref):
    # x_ref: (TB, D) native-dtype streamed tile
    # w_ref: (D, C_pad) bf16, VMEM-resident     b_ref: (1, C_pad) f32, resident
    # o_ref: (TB, C_pad) f32 output tile (lane-dense, unmasked stores)
    x = x_ref[...].astype(w_ref.dtype)          # cast-in-kernel: no extra HBM pass
    acc = jnp.dot(x, w_ref[...], preferred_element_type=jnp.float32)
    o_ref[...] = (acc + b_ref[...]).astype(o_ref.dtype)


def prepare_linear_head_params(weight, bias, compute_dtype=jnp.bfloat16):
    """One-time setup: transpose PyTorch-layout weight and pad classes to lane width.

    weight : (num_classes, latent_dim)    bias : (num_classes,)
    returns (w_t, b2) with shapes (latent_dim, C_pad), (1, C_pad); C_pad = ceil(C/128)*128.
    """
    C, D = weight.shape
    C_pad = _round_up(C, _LANE)
    w_t = jnp.zeros((D, C_pad), compute_dtype).at[:, :C].set(
        weight.T.astype(compute_dtype))
    b2 = jnp.zeros((1, C_pad), jnp.float32).at[:, :C].set(
        bias.astype(jnp.float32))
    return w_t, b2


def _choose_block_rows(B, block_rows, min_tiles):
    """Balanced tile rows: multiple of 8, <= block_rows, >= min_tiles tiles when possible."""
    if B <= _SUBLANE:
        return _SUBLANE
    max_tiles = _cdiv(B, _SUBLANE)
    n_tiles = max(_cdiv(B, block_rows), min(min_tiles, max_tiles))
    tb = _round_up(_cdiv(B, n_tiles), _SUBLANE)
    return max(_SUBLANE, min(tb, block_rows))


def linear_probe_head(latent, w_t, b2, num_classes, *,
                      block_rows=512,
                      min_tiles=4,
                      out_dtype=jnp.float32,
                      min_pallas_rows=256):
    """Pallas implementation of nn.Linear(latent_dim, num_classes).

    latent : (B, latent_dim)  any float dtype (streamed natively, cast in-kernel)
    w_t    : (latent_dim, C_pad)  pre-transposed / lane-padded weight
    b2     : (1, C_pad)           lane-padded bias
    returns: (B, num_classes) logits in out_dtype.
    """
    B, D = latent.shape
    D_w, C_pad = w_t.shape
    assert D == D_w, "latent_dim mismatch between latent and weight"

    # Fast path: tiny probe batches are dominated by launch / per-step overhead.
    if B < min_pallas_rows:
        acc = jnp.dot(latent.astype(w_t.dtype), w_t,
                      preferred_element_type=jnp.float32) + b2
        return acc[:, :num_classes].astype(out_dtype)

    tb = _choose_block_rows(B, block_rows, min_tiles)
    grid = (_cdiv(B, tb),)          # partial final tile; no jnp.pad, no row slice

    in_isz = jnp.dtype(latent.dtype).itemsize
    w_isz = jnp.dtype(w_t.dtype).itemsize
    out_isz = jnp.dtype(out_dtype).itemsize
    # Pallas double-buffers every spec'd operand, even constant-index ones.
    vmem_bytes = (2 * tb * D * in_isz            # streamed latent tiles
                  + 2 * tb * C_pad * out_isz     # output tiles
                  + 2 * D * C_pad * w_isz        # resident weight (still 2 bufs)
                  + 2 * C_pad * 4)               # resident bias
    vmem_limit = int(min(max(int(1.25 * vmem_bytes) + (1 << 20),
                             4 * 1024 * 1024),
                         64 * 1024 * 1024))      # safe under v7x's 64 MiB VMEM

    out = pl.pallas_call(
        _linear_head_kernel,
        out_shape=jax.ShapeDtypeStruct((B, C_pad), out_dtype),
        grid_spec=pltpu.PrefetchScalarGridSpec(
            num_scalar_prefetch=0,
            grid=grid,
            in_specs=[
                pl.BlockSpec((tb, D), lambda i: (i, 0)),       # streamed batch tile
                pl.BlockSpec((D, C_pad), lambda i: (0, 0)),    # weight: VMEM-resident
                pl.BlockSpec((1, C_pad), lambda i: (0, 0)),    # bias:   VMEM-resident
            ],
            out_specs=pl.BlockSpec((tb, C_pad), lambda i: (i, 0)),
        ),
        compiler_params=pltpu.CompilerParams(
            dimension_semantics=("parallel",),   # independent tiles -> megacore
            vmem_limit_bytes=vmem_limit),
    )(latent, w_t, b2)

    # Only the (small) column slice back to num_classes remains; rows are exact.
    return out[:, :num_classes]


def linear_probe_forward(latent, w_t, b2, num_classes, **kw):
    # encode(): frozen encoder with fc = Identity -> latent features pass through.
    # head(): Pallas linear-head kernel (or XLA fast path for tiny batches).
    return linear_probe_head(latent, w_t, b2, num_classes, **kw)


if __name__ == "__main__":
    # Module hyper-params (consistent with the reference script):
    latent_dim = 128 * 4      # 512
    num_classes = 10          # synthetic "len(np.unique(labels))"

    key = jax.random.PRNGKey(0)
    k_x, k_w, k_b, k_x2, k_x3 = jax.random.split(key, 5)

    # Deterministic nn.Linear(latent_dim, num_classes) params (PyTorch layout).
    bound = 1.0 / (latent_dim ** 0.5)
    weight = jax.random.uniform(k_w, (num_classes, latent_dim),
                                minval=-bound, maxval=bound, dtype=jnp.float32)
    bias = jax.random.uniform(k_b, (num_classes,),
                              minval=-bound, maxval=bound, dtype=jnp.float32)

    # One-time parameter prep (transpose + lane-pad), cached outside the hot path.
    w_t, b2 = prepare_linear_head_params(weight, bias)

    # --- (1) tiny batch: XLA fast path (skips pallas_call overhead) ---
    batch = 2
    latent = jax.random.normal(k_x, (batch, latent_dim), dtype=jnp.float32)
    out = jax.block_until_ready(linear_probe_forward(latent, w_t, b2, num_classes))
    ref = latent @ weight.T + bias
    assert out.shape == (batch, num_classes)
    assert jnp.allclose(out, ref, atol=1e-2, rtol=1e-2), \
        f"fast-path max err {jnp.max(jnp.abs(out - ref))}"

    # --- (2) small batch forced through the Pallas kernel (4 exact tiles) ---
    batch2 = 64
    latent2 = jax.random.normal(k_x2, (batch2, latent_dim), dtype=jnp.float32)
    out2 = jax.block_until_ready(
        linear_probe_forward(latent2, w_t, b2, num_classes, min_pallas_rows=0))
    ref2 = latent2 @ weight.T + bias
    assert out2.shape == (batch2, num_classes)
    assert jnp.allclose(out2, ref2, atol=1e-2, rtol=1e-2), \
        f"pallas small max err {jnp.max(jnp.abs(out2 - ref2))}"

    # --- (3) ragged batch: Pallas path, cdiv grid with a partial final tile ---
    batch3 = 300
    latent3 = jax.random.normal(k_x3, (batch3, latent_dim), dtype=jnp.float32)
    out3 = jax.block_until_ready(linear_probe_forward(latent3, w_t, b2, num_classes))
    ref3 = latent3 @ weight.T + bias
    assert out3.shape == (batch3, num_classes)
    assert jnp.allclose(out3, ref3, atol=1e-2, rtol=1e-2), \
        f"pallas ragged max err {jnp.max(jnp.abs(out3 - ref3))}"

    print("KERNEL_OK")
</pallas_src>

<mosaic_0001>
module attributes {stable_mosaic.version = 11 : i64} {
  func.func @_linear_head_kernel(%arg0: i32, %arg1: memref<16x512xf32, #tpu.memory_space<vmem>>, %arg2: memref<512x128xbf16, #tpu.memory_space<vmem>>, %arg3: memref<1x128xf32, #tpu.memory_space<vmem>>, %arg4: memref<16x128xf32, #tpu.memory_space<vmem>>) attributes {dimension_semantics = [#tpu.dimension_semantics<parallel>], iteration_bounds = array<i64: 4>, scalar_prefetch = 0 : i64, scratch_operands = 0 : i64, tpu.core_type = #tpu.core_type<tc>, window_params = [{transform_indices = @transform_0, window_bounds = array<i64: 16, 512>}, {pipeline_mode = #tpu.pipeline_mode<synchronous>, transform_indices = @transform_1, window_bounds = array<i64: 512, 128>}, {pipeline_mode = #tpu.pipeline_mode<synchronous>, transform_indices = @transform_2, window_bounds = array<i64: 1, 128>}, {transform_indices = @transform_3, window_bounds = array<i64: 16, 128>}]} {
    %c0 = arith.constant 0 : index
    %c0_0 = arith.constant 0 : index
    %0 = vector.load %arg1[%c0, %c0_0] : memref<16x512xf32, #tpu.memory_space<vmem>>, vector<16x512xf32>
    %1 = arith.truncf %0 : vector<16x512xf32> to vector<16x512xbf16>
    %c0_1 = arith.constant 0 : index
    %c0_2 = arith.constant 0 : index
    %2 = vector.load %arg2[%c0_1, %c0_2] : memref<512x128xbf16, #tpu.memory_space<vmem>>, vector<512x128xbf16>
    %cst = arith.constant dense<0.000000e+00> : vector<16x128xf32>
    %3 = tpu.matmul %1, %2, %cst {dimension_numbers = #tpu.dot_dimension_numbers<[1], [0], [0], [1], [0, 0, 1, 1], [], []>} : vector<16x512xbf16>, vector<512x128xbf16>, vector<16x128xf32> -> vector<16x128xf32>
    %c0_3 = arith.constant 0 : index
    %c0_4 = arith.constant 0 : index
    %4 = vector.load %arg3[%c0_3, %c0_4] : memref<1x128xf32, #tpu.memory_space<vmem>>, vector<1x128xf32>
    %5 = vector.broadcast %4 : vector<1x128xf32> to vector<16x128xf32>
    %6 = arith.addf %3, %5 : vector<16x128xf32>
    %c0_5 = arith.constant 0 : index
    %c0_6 = arith.constant 0 : index
    %7 = vector.load %arg4[%c0_5, %c0_6] : memref<16x128xf32, #tpu.memory_space<vmem>>, vector<16x128xf32>
    tpu.vector_store %arg4[%c0_5, %c0_6], %6 {strides = array<i32>} : memref<16x128xf32, #tpu.memory_space<vmem>>, vector<16x128xf32>,
    return
  }
  func.func @transform_0(%arg0: i32) -> (i32, i32) {
    %c0_i32 = arith.constant 0 : i32
    %c0_i32_0 = arith.constant 0 : i32
    return %arg0, %c0_i32 : i32, i32
  }
  func.func @transform_1(%arg0: i32) -> (i32, i32) {
    %c0_i32 = arith.constant 0 : i32
    %c0_i32_0 = arith.constant 0 : i32
    %c0_i32_1 = arith.constant 0 : i32
    return %c0_i32, %c0_i32_0 : i32, i32
  }
  func.func @transform_2(%arg0: i32) -> (i32, i32) {
    %c0_i32 = arith.constant 0 : i32
    %c0_i32_0 = arith.constant 0 : i32
    %c0_i32_1 = arith.constant 0 : i32
    return %c0_i32, %c0_i32_0 : i32, i32
  }
  func.func @transform_3(%arg0: i32) -> (i32, i32) {
    %c0_i32 = arith.constant 0 : i32
    %c0_i32_0 = arith.constant 0 : i32
    return %arg0, %c0_i32 : i32, i32
  }
}

</mosaic_0001>

<llo_original>
// kernel: tpu_custom_call.1
$region0: #{tpu_custom_call.1}
  #allocation0 [shape = 'u32[]', space=smem, size = 0x4, offset = 0x4, fixed_abs, tag = 'smem constant byte address 0x4 - core index']
  #allocation1 [shape = 'u32[144,128]{1,0:T(1,128)}', space=vmem, size = 0x12000, scoped, tag = 'internal scratch']
  %s0 = inlined_call_operand.hbm [shape: f32[64,512], index: 0, kind: input, shape index: {}]
  %s1 = inlined_call_operand.hbm [shape: bf16[512,128], index: 1, kind: input, shape index: {}]
  %s2 = inlined_call_operand.vmem [shape: f32[1,128], index: 2, kind: input, shape index: {}]
  %s3 = inlined_call_operand.hbm [shape: f32[64,128], index: 3, kind: output, shape index: {}]
  %s4 = sld [smem:[#allocation0]]
  $region53: #{tpu_custom_call.1} parent=0
    _
  %s6 = ssub.s32 1, %s4
  %s7 = scalar_select 0, %s6, %s4
  $region1: #{tpu_custom_call.1} parent=0
    #allocation2 [shape = 'u8[65536]{0}', space=vmem, size = 0x10000, scoped, tag = 'input window, operand 0']
    #allocation3 [shape = 's32[2]{0}', space=sflag, size = 0x8, scoped, tag = 'scoped memory for tpu_custom_call.1']
    #allocation4 [shape = 's32[2]{0}', space=sflag, size = 0x8, scoped, tag = 'scoped memory for tpu_custom_call.1']
    #allocation5 [shape = 'u8[131072]{0}', space=vmem, size = 0x20000, scoped, tag = 'input window, operand 1, single buffered']
    #allocation6 [shape = 's32[1]{0}', space=sflag, size = 0x4, scoped, tag = 'scoped memory for tpu_custom_call.1']
    #allocation7 [shape = 'u8[16384]{0}', space=vmem, size = 0x4000, scoped, tag = 'output window, operand 0']
    %8 = vsyncpa [#allocation3], 0
    %s9 = scalar_lea.sflag [#allocation3], 1
    %10 = vsyncpa %s9, 0
    %11 = vsyncpa [#allocation6], 0
    %12 = vsyncpa [#allocation4], 0
    %s13 = scalar_lea.sflag [#allocation4], 1
    %14 = vsyncpa %s13, 0
    loop: start=0, step=1, limit=6
    $region2: #{tpu_custom_call.1} parent=1 // loop_pre_header
      _
    $region3: #{tpu_custom_call.1} parent=1 // loop_header
      %s16 = sphi 0, %s20
      %p17 = scmp.ge.s32.totalorder %s16, 6
      %s26 = sphi 0, %s28
      %s29 = sphi 0, %s26
      %s30 = sphi 0, %s29
      %s46 = sphi 0, %s30
      %s50 = sphi 0, %s50
      %s52 = sphi 0, %s50
      %s53 = sphi 0, %s52
      %s67 = sphi 0, %s53
      %s71 = sphi 0, %s71
      %s73 = sphi 0, %s71
      %s74 = sphi 0, %s73
      %s88 = sphi 0, %s74
      %s94 = sphi 0, %s96
      %s97 = sphi 0, %s94
      %s98 = sphi 0, %s97
      %s114 = sphi 0, %s98
    $region4: #{tpu_custom_call.1} parent=1 // loop_header_branch
      %19 = sbr.rel (%p17) target = $region8
    $region5: #{tpu_custom_call.1} parent=1 // loop_body
      %s21 = ssub.s32 %s16, 1
      %s22 = ssub.s32 %s16, 2
      %s23 = sadd.s32 %s16, 1
      %s24 = ssub.s32 %s16, %s23
      %p25 = scmp.eq.s32.totalorder %s24, 0
      %s27 = sadd.s32 %s26, 1
      %s28 = scalar_select %p25, %s26, %s27
      %p31 = pneg %p25
      %p32 = scmp.eq.s32.totalorder %s16, 3
      %p33 = por %p31, %p32
      %p34 = scmp.ne.s32.totalorder %s26, %s29
      %p35 = scmp.eq.s32.totalorder %s16, 0
      %p36 = por %p34, %p35
      %p37 = scmp.ne.s32.totalorder %s26, %s29
      %p38 = scmp.eq.s32.totalorder %s21, 3
      %p39 = por %p37, %p38
      %p40 = scmp.ne.s32.totalorder %s29, %s30
      %p41 = scmp.eq.s32.totalorder %s21, 0
      %p42 = por %p40, %p41
      %p43 = scmp.ne.s32.totalorder %s29, %s30
      %p44 = scmp.eq.s32.totalorder %s22, 3
      %p45 = por %p43, %p44
      %p47 = scmp.ne.s32.totalorder %s30, %s46
      %p48 = scmp.eq.s32.totalorder %s22, 0
      %p49 = por %p47, %p48
      %s51 = sadd.s32 %s50, 1
      %p54 = scmp.eq.s32.totalorder %s16, 3
      %p55 = scmp.ne.s32.totalorder %s50, %s52
      %p56 = scmp.eq.s32.totalorder %s16, 0
      %p57 = por %p55, %p56
      %p58 = scmp.ne.s32.totalorder %s50, %s52
      %p59 = scmp.eq.s32.totalorder %s21, 3
      %p60 = por %p58, %p59
      %p61 = scmp.ne.s32.totalorder %s52, %s53
      %p62 = scmp.eq.s32.totalorder %s21, 0
      %p63 = por %p61, %p62
      %p64 = scmp.ne.s32.totalorder %s52, %s53
      %p65 = scmp.eq.s32.totalorder %s22, 3
      %p66 = por %p64, %p65
      %p68 = scmp.ne.s32.totalorder %s53, %s67
      %p69 = scmp.eq.s32.totalorder %s22, 0
      %p70 = por %p68, %p69
      %s72 = sadd.s32 %s71, 1
      %p75 = scmp.eq.s32.totalorder %s16, 3
      %p76 = scmp.ne.s32.totalorder %s71, %s73
      %p77 = scmp.eq.s32.totalorder %s16, 0
      %p78 = por %p76, %p77
      %p79 = scmp.ne.s32.totalorder %s71, %s73
      %p80 = scmp.eq.s32.totalorder %s21, 3
      %p81 = por %p79, %p80
      %p82 = scmp.ne.s32.totalorder %s73, %s74
      %p83 = scmp.eq.s32.totalorder %s21, 0
      %p84 = por %p82, %p83
      %p85 = scmp.ne.s32.totalorder %s73, %s74
      %p86 = scmp.eq.s32.totalorder %s22, 3
      %p87 = por %p85, %p86
      %p89 = scmp.ne.s32.totalorder %s74, %s88
      %p90 = scmp.eq.s32.totalorder %s22, 0
      %p91 = por %p89, %p90
      %s92 = ssub.s32 %s16, %s23
      %p93 = scmp.eq.s32.totalorder %s92, 0
      %s95 = sadd.s32 %s94, 1
      %s96 = scalar_select %p93, %s94, %s95
      %p99 = pneg %p93
      %p100 = scmp.eq.s32.totalorder %s16, 3
      %p101 = por %p99, %p100
      %p102 = scmp.ne.s32.totalorder %s94, %s97
      %p103 = scmp.eq.s32.totalorder %s16, 0
      %p104 = por %p102, %p103
      %p105 = scmp.ne.s32.totalorder %s94, %s97
      %p106 = scmp.eq.s32.totalorder %s21, 3
      %p107 = por %p105, %p106
      %p108 = scmp.ne.s32.totalorder %s97, %s98
      %p109 = scmp.eq.s32.totalorder %s21, 0
      %p110 = por %p108, %p109
      %p111 = scmp.ne.s32.totalorder %s97, %s98
      %p112 = scmp.eq.s32.totalorder %s22, 3
      %p113 = por %p111, %p112
      %p115 = scmp.ne.s32.totalorder %s98, %s114
      %p116 = scmp.eq.s32.totalorder %s22, 0
      %p117 = por %p115, %p116
      %p118 = scmp.le.s32.totalorder 1, %s16
      %p119 = scmp.lt.s32.totalorder %s16, 5
      %p120 = pnand %p118, %p119
      %p121 = pneg %p120
      // Predicated region
      $region9: #{tpu_custom_call.1} parent=5 // pred_check
        _
      $region10: #{tpu_custom_call.1} parent=5 // pred_check_branch
        %123 = sbr.rel (%p120) target = $region12
      $region11: #{tpu_custom_call.1} parent=5 // pred_region
        %s124 = ssub.s32 %s16, 1
        // Predicated region
        $region13: #{tpu_custom_call.1} parent=11 // pred_check
          %p125 = pneg %p63
        $region14: #{tpu_custom_call.1} parent=11 // pred_check_branch
          %127 = sbr.rel (%p125) target = $region16
        $region15: #{tpu_custom_call.1} parent=11 // pred_region
          %s129 = ssub.s32 4096, 4096
          %130 = vsyncadd [#allocation6], %s129
          %s131 = sshll.u32 [#allocation5], 4
          %s132 = int_to_ptr.vmem [resolvable:$true] %s131
          %137 = dma.hbm_to_vmem [thread:$0]  %s1, 4096, %s132, [#allocation6], 64, 64, 4
        $region16: #{tpu_custom_call.1} parent=11 // pred_fallthru
          _
        // Predicated region
        $region17: #{tpu_custom_call.1} parent=11 // pred_check
          %p138 = pneg %p84
        $region18: #{tpu_custom_call.1} parent=11 // pred_check_branch
          %140 = sbr.rel (%p138) target = $region20
        $region19: #{tpu_custom_call.1} parent=11 // pred_region
          _
        $region20: #{tpu_custom_call.1} parent=11 // pred_fallthru
          _
      $region12: #{tpu_custom_call.1} parent=5 // pred_fallthru
        _
      %p141 = scmp.lt.s32.totalorder %s16, 4
      // Predicated region
      $region21: #{tpu_custom_call.1} parent=5 // pred_check
        %p142 = pneg %p141
      $region22: #{tpu_custom_call.1} parent=5 // pred_check_branch
        %144 = sbr.rel (%p142) target = $region24
      $region23: #{tpu_custom_call.1} parent=5 // pred_region
        // Predicated region
        $region25: #{tpu_custom_call.1} parent=23 // pred_check
          %p145 = pneg %p36
        $region26: #{tpu_custom_call.1} parent=23 // pred_check_branch
          %147 = sbr.rel (%p145) target = $region28
        $region27: #{tpu_custom_call.1} parent=23 // pred_region
          %s148 = sand.u32 %s26, 1
          %s149 = scalar_lea.sflag [#allocation3], %s148
          %s150 = sand.u32 %s26, 1
          %s151 = smul.addr %s150, 64
          %s152 = scalar_lea.vmem [#allocation2], %s151
          %s153 = smul.u32 2, %s16
          %s155 = ssub.s32 1024, 1024
          %156 = vsyncadd %s149, %s155
          %s157 = smul.addr %s153, 4
          %s158 = smul.addr %s157, 128
          %s159 = scalar_lea.hbm %s0, %s158
          %s160 = sshll.u32 %s152, 4
          %s161 = int_to_ptr.vmem [resolvable:$true] %s160
          %166 = dma.hbm_to_vmem [thread:$0]  %s159, 1024, %s161, %s149, 512, 512, 32
        $region28: #{tpu_custom_call.1} parent=23 // pred_fallthru
          _
      $region24: #{tpu_custom_call.1} parent=5 // pred_fallthru
        _
      %p167 = scmp.le.s32.totalorder 1, %s16
      %p168 = scmp.lt.s32.totalorder %s16, 5
      %p169 = pnand %p167, %p168
      %p170 = pneg %p169
      // Predicated region
      $region29: #{tpu_custom_call.1} parent=5 // pred_check
        _
      $region30: #{tpu_custom_call.1} parent=5 // pred_check_branch
        %172 = sbr.rel (%p169) target = $region32
      $region31: #{tpu_custom_call.1} parent=5 // pred_region
        %s173 = ssub.s32 %s16, 1
        %s174 = sand.u32 %s29, 1
        %s175 = scalar_lea.sflag [#allocation3], %s174
        %s176 = sand.u32 %s29, 1
        %s177 = smul.addr %s176, 64
        %s178 = scalar_lea.vmem [#allocation2], %s177
        // Predicated region
        $region33: #{tpu_custom_call.1} parent=31 // pred_check
          %p179 = pneg %p42
        $region34: #{tpu_custom_call.1} parent=31 // pred_check_branch
          %181 = sbr.rel (%p179) target = $region36
        $region35: #{tpu_custom_call.1} parent=31 // pred_region
          %182 = dma.done %s175, 1024
        $region36: #{tpu_custom_call.1} parent=31 // pred_fallthru
          _
        // Predicated region
        $region37: #{tpu_custom_call.1} parent=31 // pred_check
          %p183 = pneg %p63
        $region38: #{tpu_custom_call.1} parent=31 // pred_check_branch
          %185 = sbr.rel (%p183) target = $region40
        $region39: #{tpu_custom_call.1} parent=31 // pred_region
          %186 = dma.done [#allocation6], 4096
        $region40: #{tpu_custom_call.1} parent=31 // pred_fallthru
          _
        %s187 = sand.u32 %s29, 1
        %s188 = scalar_lea.sflag [#allocation3], %s187
        %s189 = sand.u32 %s29, 1
        %s190 = smul.addr %s189, 64
        %s191 = scalar_lea.vmem [#allocation2], %s190
        %p192 = pneg %p42
        %p193 = pneg %p39
        %p194 = pneg %p63
        %p195 = pneg %p60
        %p196 = pneg %p84
        %p197 = pneg %p81
        %p198 = pneg %p110
        %p199 = pneg %p107
        %s200 = sand.u32 %s97, 1
        %s201 = scalar_lea.sflag [#allocation4], %s200
        %s202 = sand.u32 %s97, 1
        %s203 = smul.addr %s202, 16
        %s204 = scalar_lea.vmem [#allocation7], %s203
        %s205 = smul.u32 2, %s21
        %s206 = smul.u32 2, %s21
        %v208 = vld [vmem:[%s178] sm:$0xff]
        %v209 = vld [vmem:[%s178 + $0x8] sm:$0xff]
        %v210 = vld [vmem:[%s178 + $0x10] sm:$0xff]
        %v211 = vld [vmem:[%s178 + $0x18] sm:$0xff]
        %v212 = vld [vmem:[%s178 + $0x20] sm:$0xff]
        %v213 = vld [vmem:[%s178 + $0x28] sm:$0xff]
        %v214 = vld [vmem:[%s178 + $0x30] sm:$0xff]
        %v215 = vld [vmem:[%s178 + $0x38] sm:$0xff]
        %v216 = vpack.c.bf16 %v212, %v208
        %v217 = vpack.c.bf16 %v213, %v209
        %v218 = vpack.c.bf16 %v214, %v210
        %v219 = vpack.c.bf16 %v215, %v211
        %v220 = vld [vmem:[#allocation5] sm:$0xf]
        %v221 = vld [vmem:[#allocation5 + $0x4] sm:$0xf]
        %v222 = vld [vmem:[#allocation5 + $0x8] sm:$0xf]
        %v223 = vld [vmem:[#allocation5 + $0xc] sm:$0xf]
        %v224 = vld [vmem:[#allocation5 + $0x10] sm:$0xf]
        %v225 = vld [vmem:[#allocation5 + $0x14] sm:$0xf]
        %v226 = vld [vmem:[#allocation5 + $0x18] sm:$0xf]
        %v227 = vld [vmem:[#allocation5 + $0x1c] sm:$0xf]
        %v228 = vld [vmem:[#allocation5 + $0x20] sm:$0xf]
        %v229 = vld [vmem:[#allocation5 + $0x24] sm:$0xf]
        %v230 = vld [vmem:[#allocation5 + $0x28] sm:$0xf]
        %v231 = vld [vmem:[#allocation5 + $0x2c] sm:$0xf]
        %v232 = vld [vmem:[#allocation5 + $0x30] sm:$0xf]
        %v233 = vld [vmem:[#allocation5 + $0x34] sm:$0xf]
        %v234 = vld [vmem:[#allocation5 + $0x38] sm:$0xf]
        %v235 = vld [vmem:[#allocation5 + $0x3c] sm:$0xf]
        %v236 = vld [vmem:[#allocation5 + $0x40] sm:$0xf]
        %v237 = vld [vmem:[#allocation5 + $0x44] sm:$0xf]
        %v238 = vld [vmem:[#allocation5 + $0x48] sm:$0xf]
        %v239 = vld [vmem:[#allocation5 + $0x4c] sm:$0xf]
        %v240 = vld [vmem:[#allocation5 + $0x50] sm:$0xf]
        %v241 = vld [vmem:[#allocation5 + $0x54] sm:$0xf]
        %v242 = vld [vmem:[#allocation5 + $0x58] sm:$0xf]
        %v243 = vld [vmem:[#allocation5 + $0x5c] sm:$0xf]
        %v244 = vld [vmem:[#allocation5 + $0x60] sm:$0xf]
        %v245 = vld [vmem:[#allocation5 + $0x64] sm:$0xf]
        %v246 = vld [vmem:[#allocation5 + $0x68] sm:$0xf]
        %v247 = vld [vmem:[#allocation5 + $0x6c] sm:$0xf]
        %v248 = vld [vmem:[#allocation5 + $0x70] sm:$0xf]
        %v249 = vld [vmem:[#allocation5 + $0x74] sm:$0xf]
        %v250 = vld [vmem:[#allocation5 + $0x78] sm:$0xf]
        %v251 = vld [vmem:[#allocation5 + $0x7c] sm:$0xf]
        %v252 = vld [vmem:[#allocation5 + $0x80] sm:$0xf]
        %v253 = vld [vmem:[#allocation5 + $0x84] sm:$0xf]
        %v254 = vld [vmem:[#allocation5 + $0x88] sm:$0xf]
        %v255 = vld [vmem:[#allocation5 + $0x8c] sm:$0xf]
        %v256 = vld [vmem:[#allocation5 + $0x90] sm:$0xf]
        %v257 = vld [vmem:[#allocation5 + $0x94] sm:$0xf]
        %v258 = vld [vmem:[#allocation5 + $0x98] sm:$0xf]
        %v259 = vld [vmem:[#allocation5 + $0x9c] sm:$0xf]
        %v260 = vld [vmem:[#allocation5 + $0xa0] sm:$0xf]
        %v261 = vld [vmem:[#allocation5 + $0xa4] sm:$0xf]
        %v262 = vld [vmem:[#allocation5 + $0xa8] sm:$0xf]
        %v263 = vld [vmem:[#allocation5 + $0xac] sm:$0xf]
        %v264 = vld [vmem:[#allocation5 + $0xb0] sm:$0xf]
        %v265 = vld [vmem:[#allocation5 + $0xb4] sm:$0xf]
        %v266 = vld [vmem:[#allocation5 + $0xb8] sm:$0xf]
        %v267 = vld [vmem:[#allocation5 + $0xbc] sm:$0xf]
        %v268 = vld [vmem:[#allocation5 + $0xc0] sm:$0xf]
        %v269 = vld [vmem:[#allocation5 + $0xc4] sm:$0xf]
        %v270 = vld [vmem:[#allocation5 + $0xc8] sm:$0xf]
        %v271 = vld [vmem:[#allocation5 + $0xcc] sm:$0xf]
        %v272 = vld [vmem:[#allocation5 + $0xd0] sm:$0xf]
        %v273 = vld [vmem:[#allocation5 + $0xd4] sm:$0xf]
        %v274 = vld [vmem:[#allocation5 + $0xd8] sm:$0xf]
        %v275 = vld [vmem:[#allocation5 + $0xdc] sm:$0xf]
        %v276 = vld [vmem:[#allocation5 + $0xe0] sm:$0xf]
        %v277 = vld [vmem:[#allocation5 + $0xe4] sm:$0xf]
        %v278 = vld [vmem:[#allocation5 + $0xe8] sm:$0xf]
        %v279 = vld [vmem:[#allocation5 + $0xec] sm:$0xf]
        %v280 = vld [vmem:[#allocation5 + $0xf0] sm:$0xf]
        %v281 = vld [vmem:[#allocation5 + $0xf4] sm:$0xf]
        %v282 = vld [vmem:[#allocation5 + $0xf8] sm:$0xf]
        %v283 = vld [vmem:[#allocation5 + $0xfc] sm:$0xf]
        %v284 = vld [vmem:[%s2] sm:$0x1]
        %v286 = vlaneseq
        %v287 = vshrl.u32 %v286, 7
        %v288 = vsub.s32 0, %v287
        %v289 = vrot.slane %v284, %v288
        %v355 = vunpack.c.l.b16 %v220
        %v356 = vunpack.c.l.b16 %v221
        %v357 = vunpack.c.l.b16 %v222
        %v358 = vunpack.c.l.b16 %v223
        %v359 = vunpack.c.l.b16 %v224
        %v360 = vunpack.c.l.b16 %v225
        %v361 = vunpack.c.l.b16 %v226
        %v362 = vunpack.c.l.b16 %v227
        %v363 = vunpack.c.l.b16 %v228
        %v364 = vunpack.c.l.b16 %v229
        %v365 = vunpack.c.l.b16 %v230
        %v366 = vunpack.c.l.b16 %v231
        %v367 = vunpack.c.l.b16 %v232
        %v368 = vunpack.c.l.b16 %v233
        %v369 = vunpack.c.l.b16 %v234
        %v370 = vunpack.c.l.b16 %v235
        %v371 = vunpack.c.l.b16 %v236
        %v372 = vunpack.c.l.b16 %v237
        %v373 = vunpack.c.l.b16 %v238
        %v374 = vunpack.c.l.b16 %v239
        %v375 = vunpack.c.l.b16 %v240
        %v376 = vunpack.c.l.b16 %v241
        %v377 = vunpack.c.l.b16 %v242
        %v378 = vunpack.c.l.b16 %v243
        %v379 = vunpack.c.l.b16 %v244
        %v380 = vunpack.c.l.b16 %v245
        %v381 = vunpack.c.l.b16 %v246
        %v382 = vunpack.c.l.b16 %v247
        %v383 = vunpack.c.l.b16 %v248
        %v384 = vunpack.c.l.b16 %v249
        %v385 = vunpack.c.l.b16 %v250
        %v386 = vunpack.c.l.b16 %v251
        %v387 = vunpack.c.l.b16 %v252
        %v388 = vunpack.c.l.b16 %v253
        %v389 = vunpack.c.l.b16 %v254
        %v390 = vunpack.c.l.b16 %v255
        %v391 = vunpack.c.l.b16 %v256
        %v392 = vunpack.c.l.b16 %v257
        %v393 = vunpack.c.l.b16 %v258
        %v394 = vunpack.c.l.b16 %v259
        %v395 = vunpack.c.l.b16 %v260
        %v396 = vunpack.c.l.b16 %v261
        %v397 = vunpack.c.l.b16 %v262
        %v398 = vunpack.c.l.b16 %v263
        %v399 = vunpack.c.l.b16 %v264
        %v400 = vunpack.c.l.b16 %v265
        %v401 = vunpack.c.l.b16 %v266
        %v402 = vunpack.c.l.b16 %v267
        %v403 = vunpack.c.l.b16 %v268
        %v404 = vunpack.c.l.b16 %v269
        %v405 = vunpack.c.l.b16 %v270
        %v406 = vunpack.c.l.b16 %v271
        %v407 = vunpack.c.l.b16 %v272
        %v408 = vunpack.c.l.b16 %v273
        %v409 = vunpack.c.l.b16 %v274
        %v410 = vunpack.c.l.b16 %v275
        %v411 = vunpack.c.l.b16 %v276
        %v412 = vunpack.c.l.b16 %v277
        %v413 = vunpack.c.l.b16 %v278
        %v414 = vunpack.c.l.b16 %v279
        %v415 = vunpack.c.l.b16 %v280
        %v416 = vunpack.c.l.b16 %v281
        %v417 = vunpack.c.l.b16 %v282
        %v418 = vunpack.c.l.b16 %v283
        %v419 = vpack.c.b16 %v356, %v355
        %v420 = vpack.c.b16 %v358, %v357
        %v421 = vpack.c.b16 %v360, %v359
        %v422 = vpack.c.b16 %v362, %v361
        %v423 = vpack.c.b16 %v364, %v363
        %v424 = vpack.c.b16 %v366, %v365
        %v425 = vpack.c.b16 %v368, %v367
        %v426 = vpack.c.b16 %v370, %v369
        %v427 = vpack.c.b16 %v372, %v371
        %v428 = vpack.c.b16 %v374, %v373
        %v429 = vpack.c.b16 %v376, %v375
        %v430 = vpack.c.b16 %v378, %v377
        %v431 = vpack.c.b16 %v380, %v379
        %v432 = vpack.c.b16 %v382, %v381
        %v433 = vpack.c.b16 %v384, %v383
        %v434 = vpack.c.b16 %v386, %v385
        %v435 = vpack.c.b16 %v388, %v387
        %v436 = vpack.c.b16 %v390, %v389
        %v437 = vpack.c.b16 %v392, %v391
        %v438 = vpack.c.b16 %v394, %v393
        %v439 = vpack.c.b16 %v396, %v395
        %v440 = vpack.c.b16 %v398, %v397
        %v441 = vpack.c.b16 %v400, %v399
        %v442 = vpack.c.b16 %v402, %v401
        %v443 = vpack.c.b16 %v404, %v403
        %v444 = vpack.c.b16 %v406, %v405
        %v445 = vpack.c.b16 %v408, %v407
        %v446 = vpack.c.b16 %v410, %v409
        %v447 = vpack.c.b16 %v412, %v411
        %v448 = vpack.c.b16 %v414, %v413
        %v449 = vpack.c.b16 %v416, %v415
        %v450 = vpack.c.b16 %v418, %v417
        %483 = vmatprep.subr.bf16.mxu0 0
        %484 = vmatpush1.bf16.msra.mxu0 %v419
        %485 = vmatprep.subr.bf16.mxu0 0
        %486 = vmatpush1.bf16.msra.mxu0 %v420
        %487 = vmatprep.subr.bf16.mxu0 0
        %488 = vmatpush1.bf16.msra.mxu0 %v421
        %489 = vmatprep.subr.bf16.mxu0 0
        %490 = vmatpush1.bf16.msra.mxu0 %v422
        %491 = vmatprep.subr.bf16.mxu0 0
        %492 = vmatpush1.bf16.msra.mxu0 %v423
        %493 = vmatprep.subr.bf16.mxu0 0
        %494 = vmatpush1.bf16.msra.mxu0 %v424
        %495 = vmatprep.subr.bf16.mxu0 0
        %496 = vmatpush1.bf16.msra.mxu0 %v425
        %497 = vmatprep.subr.bf16.mxu0 0
        %498 = vmatpush1.bf16.msra.mxu0 %v426
        %499 = vmatprep.subr.bf16.mxu0 0
        %500 = vmatpush1.bf16.msra.mxu0 %v427
        %501 = vmatprep.subr.bf16.mxu0 0
        %502 = vmatpush1.bf16.msra.mxu0 %v428
        %503 = vmatprep.subr.bf16.mxu0 0
        %504 = vmatpush1.bf16.msra.mxu0 %v429
        %505 = vmatprep.subr.bf16.mxu0 0
        %506 = vmatpush1.bf16.msra.mxu0 %v430
        %507 = vmatprep.subr.bf16.mxu0 0
        %508 = vmatpush1.bf16.msra.mxu0 %v431
        %509 = vmatprep.subr.bf16.mxu0 0
        %510 = vmatpush1.bf16.msra.mxu0 %v432
        %511 = vmatprep.subr.bf16.mxu0 0
        %512 = vmatpush1.bf16.msra.mxu0 %v433
        %513 = vmatprep.subr.bf16.mxu0 0
        %514 = vmatpush1.bf16.msra.mxu0 %v434
        %515 = vmatprep.mubr.bf16.mxu0 %v217
        %516 = vmatmul.mubr.bf16.gmra.mrb[0].mxu0 %v216
        %v517 = vpop.f32.mrb[0].mxu0
        %v518 = vadd.f32 %v289, %v517
        %v519 = vpop.f32.mrb[0].mxu0
        %v520 = vpop.f32.mrb[0].mxu0
        %v521 = vadd.f32 %v289, %v520
        %v522 = vpop.f32.mrb[0].mxu0
        %523 = vdwg.mxu0
        %524 = vmatprep.subr.bf16.mxu0 0
        %525 = vmatpush1.bf16.msra.mxu0 %v435
        %526 = vmatprep.subr.bf16.mxu0 0
        %527 = vmatpush1.bf16.msra.mxu0 %v436
        %528 = vmatprep.subr.bf16.mxu0 0
        %529 = vmatpush1.bf16.msra.mxu0 %v437
        %530 = vmatprep.subr.bf16.mxu0 0
        %531 = vmatpush1.bf16.msra.mxu0 %v438
        %532 = vmatprep.subr.bf16.mxu0 0
        %533 = vmatpush1.bf16.msra.mxu0 %v439
        %534 = vmatprep.subr.bf16.mxu0 0
        %535 = vmatpush1.bf16.msra.mxu0 %v440
        %536 = vmatprep.subr.bf16.mxu0 0
        %537 = vmatpush1.bf16.msra.mxu0 %v441
        %538 = vmatprep.subr.bf16.mxu0 0
        %539 = vmatpush1.bf16.msra.mxu0 %v442
        %540 = vmatprep.subr.bf16.mxu0 0
        %541 = vmatpush1.bf16.msra.mxu0 %v443
        %542 = vmatprep.subr.bf16.mxu0 0
        %543 = vmatpush1.bf16.msra.mxu0 %v444
        %544 = vmatprep.subr.bf16.mxu0 0
        %545 = vmatpush1.bf16.msra.mxu0 %v445
        %546 = vmatprep.subr.bf16.mxu0 0
        %547 = vmatpush1.bf16.msra.mxu0 %v446
        %548 = vmatprep.subr.bf16.mxu0 0
        %549 = vmatpush1.bf16.msra.mxu0 %v447
        %550 = vmatprep.subr.bf16.mxu0 0
        %551 = vmatpush1.bf16.msra.mxu0 %v448
        %552 = vmatprep.subr.bf16.mxu0 0
        %553 = vmatpush1.bf16.msra.mxu0 %v449
        %554 = vmatprep.subr.bf16.mxu0 0
        %555 = vmatpush1.bf16.msra.mxu0 %v450
        %556 = vmatprep.mubr.bf16.mxu0 %v219
        %557 = vmatmul.mubr.bf16.gmra.mrb[0].mxu0 %v218
        %v558 = vpop.f32.mrb[0].mxu0
        %v559 = vadd.f32 %v518, %v558
        %v560 = vpop.f32.mrb[0].mxu0
        %v561 = vpop.f32.mrb[0].mxu0
        %v562 = vadd.f32 %v521, %v561
        %v563 = vpop.f32.mrb[0].mxu0
        %564 = vdwg.mxu0
        %565 = vst [vmem:[%s204] sm:$0xff] %v559
        %566 = vst [vmem:[%s204 + $0x8] sm:$0xff] %v562
        %s567 = sand.u32 %s97, 1
        %s568 = scalar_lea.sflag [#allocation4], %s567
        %s569 = sand.u32 %s97, 1
        %s570 = smul.addr %s569, 16
        %s571 = scalar_lea.vmem [#allocation7], %s570
        // Predicated region
        $region41: #{tpu_custom_call.1} parent=31 // pred_check
          %p572 = pneg %p107
        $region42: #{tpu_custom_call.1} parent=31 // pred_check_branch
          %574 = sbr.rel (%p572) target = $region44
        $region43: #{tpu_custom_call.1} parent=31 // pred_region
          %s575 = smul.u32 2, %s21
          %s577 = ssub.s32 256, 256
          %578 = vsyncadd %s568, %s577
          %s579 = smul.addr %s575, 128
          %s580 = scalar_lea.hbm %s3, %s579
          %s581 = sshll.u32 %s571, 4
          %s582 = int_to_ptr.vmem [resolvable:$true] %s581
          %587 = dma.vmem_to_hbm [thread:$0]  %s582, 256, %s580, %s568, 128, 128, 8
        $region44: #{tpu_custom_call.1} parent=31 // pred_fallthru
          _
      $region32: #{tpu_custom_call.1} parent=5 // pred_fallthru
        _
      %p588 = scmp.le.s32.totalorder 2, %s16
      // Predicated region
      $region45: #{tpu_custom_call.1} parent=5 // pred_check
        %p589 = pneg %p588
      $region46: #{tpu_custom_call.1} parent=5 // pred_check_branch
        %591 = sbr.rel (%p589) target = $region48
      $region47: #{tpu_custom_call.1} parent=5 // pred_region
        %s592 = ssub.s32 %s16, 2
        // Predicated region
        $region49: #{tpu_custom_call.1} parent=47 // pred_check
          %p593 = pneg %p113
        $region50: #{tpu_custom_call.1} parent=47 // pred_check_branch
          %595 = sbr.rel (%p593) target = $region52
        $region51: #{tpu_custom_call.1} parent=47 // pred_region
          %s596 = sand.u32 %s98, 1
          %s597 = scalar_lea.sflag [#allocation4], %s596
          %s598 = sand.u32 %s98, 1
          %s599 = smul.addr %s598, 16
          %s600 = scalar_lea.vmem [#allocation7], %s599
          %601 = dma.done %s597, 256
        $region52: #{tpu_custom_call.1} parent=47 // pred_fallthru
          _
      $region48: #{tpu_custom_call.1} parent=5 // pred_fallthru
        _
    $region6: #{tpu_custom_call.1} parent=1 // loop_footer
      %s20 = sadd.s32 1, %s16
    $region7: #{tpu_custom_call.1} parent=1 // loop_footer_branch
      %15 = sbr.rel target = $region3
    $region8: #{tpu_custom_call.1} parent=1 // loop_exit
      _
    %602 = vsyncpa [#allocation3], 1
    %s603 = scalar_lea.sflag [#allocation3], 1
    %604 = vsyncpa %s603, 1
    %605 = vsyncpa [#allocation6], 1
    %606 = vsyncpa [#allocation4], 1
    %s607 = scalar_lea.sflag [#allocation4], 1
    %608 = vsyncpa %s607, 1

</llo_original>
